<compile_context>
chip_gen: v6e
topology: v6e:2x2x1
jax: 0.10.0
libtpu: 0.0.40
codegen_flags: <defaults>
</compile_context>

<pallas_src>
import functools

import jax
import jax.numpy as jnp
from jax import lax
from jax.experimental import pallas as pl
from jax.experimental.pallas import tpu as pltpu


def _conv_bn_relu_kernel(x_ref, w_ref, scale_ref, shift_ref, o_ref, rhs_ref, *,
                         kh: int, kw: int, wp: int, cin: int, r_out: int):
    """One batch element per grid step.

    x_ref     : [1, Cin, R_in]        zero-padded input, (H, W) flattened row-major
    w_ref     : [Cout, kh*kw*Cin]     conv taps, K ordered (tap-major, Cin-minor)
    scale_ref : [Cout, 1]             fused BN scale  (gamma / sqrt(var + eps))
    shift_ref : [Cout, 1]             fused BN shift  (beta - mean * scale)
    o_ref     : [1, Cout, r_out]      r_out = Ho*Wp (cols w >= Wo cropped by wrapper)
    rhs_ref   : [kh*kw*Cin, r_out]    VMEM scratch (im2col slab)
    """
    xb = x_ref[0, :, :]                                    # [Cin, R_in]

    # im2col into VMEM scratch: tap t = i*kw + j occupies rows [t*Cin, (t+1)*Cin).
    # In the flattened spatial layout, tap (i, j) is a contiguous lane slice at
    # static offset i*Wp + j.
    for t in range(kh * kw):
        i, j = divmod(t, kw)
        off = i * wp + j
        rhs_ref[t * cin:(t + 1) * cin, :] = xb[:, off:off + r_out]

    # Single MXU matmul: [Cout, K] @ [K, r_out] -> f32 accumulator.
    acc = jnp.dot(w_ref[...], rhs_ref[...], preferred_element_type=jnp.float32)

    # Fused BatchNorm (affine / running-stats form) + ReLU epilogue.
    y = acc * scale_ref[...] + shift_ref[...]              # broadcast [Cout,1] over lanes
    y = jnp.maximum(y, 0.0)
    o_ref[0, :, :] = y.astype(o_ref.dtype)


def conv_block(x, weight, gamma, beta, running_mean, running_var, *,
               stride: int = 1, padding: int = 0, eps: float = 1e-5):
    """ConvBlock forward.  x: [N, Cin, H, W]; weight: [Cout, Cin, kH, kW]; BN params: [Cout]."""
    # TODO(synk): BatchNorm is applied in eval / running-stats affine form; training-mode
    # batch statistics would need an extra cross-batch reduction pass.
    N, Cin, H, W = x.shape
    Cout, _, kH, kW = weight.shape
    Hp, Wp = H + 2 * padding, W + 2 * padding
    Ho_d, Wo_d = Hp - kH + 1, Wp - kW + 1                 # dense (stride-1) output extent
    assert Ho_d > 0 and Wo_d > 0, "kernel larger than padded input"
    Ho = (Hp - kH) // stride + 1
    Wo = (Wp - kW) // stride + 1

    # Layout plumbing only (no arithmetic): zero-pad, add `extra` bottom rows so every
    # shifted lane-slice in the kernel stays in bounds, then flatten (H, W).
    extra = (-(-(kW - 1) // Wp)) if kW > 1 else 0
    x_pad = jnp.pad(x, ((0, 0), (0, 0), (padding, padding + extra), (padding, padding)))
    r_in = (Hp + extra) * Wp
    x_flat = x_pad.reshape(N, Cin, r_in)

    # Conv taps as one [Cout, kH*kW*Cin] matrix, K ordered (tap-major, Cin-minor) to
    # match the im2col scratch row layout built inside the kernel.
    K = kH * kW * Cin
    w2d = jnp.transpose(weight, (0, 2, 3, 1)).reshape(Cout, K).astype(x.dtype)

    # Fused BN (eval-mode) as per-channel affine.
    inv_std = 1.0 / jnp.sqrt(running_var.astype(jnp.float32) + eps)
    scale = (gamma * inv_std).astype(jnp.float32).reshape(Cout, 1)
    shift = (beta - running_mean * gamma * inv_std).astype(jnp.float32).reshape(Cout, 1)

    r_out = Ho_d * Wp
    kernel = functools.partial(_conv_bn_relu_kernel,
                               kh=kH, kw=kW, wp=Wp, cin=Cin, r_out=r_out)

    flops = 2 * N * Cout * K * r_out + 3 * N * Cout * r_out
    bytes_accessed = 4 * (N * Cin * r_in + Cout * K + 2 * Cout + N * Cout * r_out)

    out_flat = pl.pallas_call(
        kernel,
        out_shape=jax.ShapeDtypeStruct((N, Cout, r_out), x.dtype),
        grid=(N,),
        in_specs=[
            pl.BlockSpec((1, Cin, r_in), lambda n: (n, 0, 0)),   # per-batch input slab
            pl.BlockSpec((Cout, K), lambda n: (0, 0)),           # weights, VMEM-resident
            pl.BlockSpec((Cout, 1), lambda n: (0, 0)),           # BN scale
            pl.BlockSpec((Cout, 1), lambda n: (0, 0)),           # BN shift
        ],
        out_specs=pl.BlockSpec((1, Cout, r_out), lambda n: (n, 0, 0)),
        scratch_shapes=[pltpu.VMEM((K, r_out), x.dtype)],        # im2col slab
        compiler_params=pltpu.CompilerParams(
            dimension_semantics=("parallel",),      # shard batch across TCs (megacore)
            vmem_limit_bytes=32 * 1024 * 1024,      # explicit, safe on v5e/v6e/v7x
        ),
        cost_estimate=pl.CostEstimate(
            flops=flops, transcendentals=0, bytes_accessed=bytes_accessed),
    )(x_flat, w2d, scale, shift)

    # Crop garbage columns (w >= Wo_d), restore NCHW, and downsample for stride > 1.
    # TODO(synk): stride > 1 computes all dense positions then downsamples; a strided
    # output-column gather in-kernel would avoid the wasted compute.
    out = out_flat.reshape(N, Cout, Ho_d, Wp)[:, :, ::stride, :Wo_d:stride]
    assert out.shape == (N, Cout, Ho, Wo)
    return out


if __name__ == "__main__":
    N, Cin, Cout = 2, 4, 8
    H = W = 16
    ksize, stride, padding = 3, 1, 1
    eps = 1e-5

    key = jax.random.PRNGKey(0)
    k_x, k_w, k_g, k_b, k_m, k_v = jax.random.split(key, 6)
    x = jax.random.normal(k_x, (N, Cin, H, W), dtype=jnp.float32)
    weight = 0.1 * jax.random.normal(k_w, (Cout, Cin, ksize, ksize), dtype=jnp.float32)
    gamma = 0.5 + jax.random.uniform(k_g, (Cout,), dtype=jnp.float32)
    beta = 0.1 * jax.random.normal(k_b, (Cout,), dtype=jnp.float32)
    running_mean = 0.1 * jax.random.normal(k_m, (Cout,), dtype=jnp.float32)
    running_var = 0.5 + jax.random.uniform(k_v, (Cout,), dtype=jnp.float32)

    out = conv_block(x, weight, gamma, beta, running_mean, running_var,
                     stride=stride, padding=padding, eps=eps)
    out = jax.block_until_ready(out)
    assert out.shape == (N, Cout, H, W)

    # Reference: XLA conv + identical affine BN + ReLU.
    conv_ref = lax.conv_general_dilated(
        x, weight, window_strides=(stride, stride),
        padding=((padding, padding), (padding, padding)),
        dimension_numbers=("NCHW", "OIHW", "NCHW"),
        precision=lax.Precision.HIGHEST)
    inv_std = 1.0 / jnp.sqrt(running_var + eps)
    scale4 = (gamma * inv_std).reshape(1, Cout, 1, 1)
    shift4 = (beta - running_mean * gamma * inv_std).reshape(1, Cout, 1, 1)
    ref = jnp.maximum(conv_ref * scale4 + shift4, 0.0)
    assert jnp.allclose(out, ref, atol=2e-2, rtol=2e-2), float(jnp.max(jnp.abs(out - ref)))

    print("KERNEL_OK")
</pallas_src>

<mosaic_0001>
module attributes {stable_mosaic.version = 11 : i64} {
  func.func @_conv_bn_relu_kernel(%arg0: i32, %arg1: memref<1x4x342xf32, #tpu.memory_space<vmem>>, %arg2: memref<8x36xf32, #tpu.memory_space<vmem>>, %arg3: memref<8x1xf32, #tpu.memory_space<vmem>>, %arg4: memref<8x1xf32, #tpu.memory_space<vmem>>, %arg5: memref<1x8x288xf32, #tpu.memory_space<vmem>>, %arg6: memref<36x288xf32, #tpu.memory_space<vmem>>) attributes {dimension_semantics = [#tpu.dimension_semantics<parallel>], iteration_bounds = array<i64: 2>, scalar_prefetch = 0 : i64, scratch_operands = 1 : i64, tpu.core_type = #tpu.core_type<tc>, window_params = [{transform_indices = @transform_0, window_bounds = array<i64: 1, 4, 342>}, {pipeline_mode = #tpu.pipeline_mode<synchronous>, transform_indices = @transform_1, window_bounds = array<i64: 8, 36>}, {pipeline_mode = #tpu.pipeline_mode<synchronous>, transform_indices = @transform_2, window_bounds = array<i64: 8, 1>}, {pipeline_mode = #tpu.pipeline_mode<synchronous>, transform_indices = @transform_3, window_bounds = array<i64: 8, 1>}, {transform_indices = @transform_4, window_bounds = array<i64: 1, 8, 288>}]} {
    %c0 = arith.constant 0 : index
    %c0_0 = arith.constant 0 : index
    %c0_1 = arith.constant 0 : index
    %0 = vector.load %arg1[%c0, %c0_0, %c0_1] : memref<1x4x342xf32, #tpu.memory_space<vmem>>, vector<1x4x342xf32>
    %1 = vector.shape_cast %0 : vector<1x4x342xf32> to vector<4x342xf32>
    %2 = vector.extract_strided_slice %1 {offsets = [0, 0], sizes = [4, 288], strides = [1, 1]} : vector<4x342xf32> to vector<4x288xf32>
    %c0_2 = arith.constant 0 : index
    %c0_3 = arith.constant 0 : index
    %3 = vector.load %arg6[%c0_2, %c0_3] : memref<36x288xf32, #tpu.memory_space<vmem>>, vector<4x288xf32>
    tpu.vector_store %arg6[%c0_2, %c0_3], %2 {strides = array<i32>} : memref<36x288xf32, #tpu.memory_space<vmem>>, vector<4x288xf32>,
    %4 = vector.extract_strided_slice %1 {offsets = [0, 1], sizes = [4, 288], strides = [1, 1]} : vector<4x342xf32> to vector<4x288xf32>
    %c4 = arith.constant 4 : index
    %c0_4 = arith.constant 0 : index
    %5 = vector.load %arg6[%c4, %c0_4] : memref<36x288xf32, #tpu.memory_space<vmem>>, vector<4x288xf32>
    tpu.vector_store %arg6[%c4, %c0_4], %4 {strides = array<i32>} : memref<36x288xf32, #tpu.memory_space<vmem>>, vector<4x288xf32>,
    %6 = vector.extract_strided_slice %1 {offsets = [0, 2], sizes = [4, 288], strides = [1, 1]} : vector<4x342xf32> to vector<4x288xf32>
    %c8 = arith.constant 8 : index
    %c0_5 = arith.constant 0 : index
    %7 = vector.load %arg6[%c8, %c0_5] : memref<36x288xf32, #tpu.memory_space<vmem>>, vector<4x288xf32>
    tpu.vector_store %arg6[%c8, %c0_5], %6 {strides = array<i32>} : memref<36x288xf32, #tpu.memory_space<vmem>>, vector<4x288xf32>,
    %8 = vector.extract_strided_slice %1 {offsets = [0, 18], sizes = [4, 288], strides = [1, 1]} : vector<4x342xf32> to vector<4x288xf32>
    %c12 = arith.constant 12 : index
    %c0_6 = arith.constant 0 : index
    %9 = vector.load %arg6[%c12, %c0_6] : memref<36x288xf32, #tpu.memory_space<vmem>>, vector<4x288xf32>
    tpu.vector_store %arg6[%c12, %c0_6], %8 {strides = array<i32>} : memref<36x288xf32, #tpu.memory_space<vmem>>, vector<4x288xf32>,
    %10 = vector.extract_strided_slice %1 {offsets = [0, 19], sizes = [4, 288], strides = [1, 1]} : vector<4x342xf32> to vector<4x288xf32>
    %c16 = arith.constant 16 : index
    %c0_7 = arith.constant 0 : index
    %11 = vector.load %arg6[%c16, %c0_7] : memref<36x288xf32, #tpu.memory_space<vmem>>, vector<4x288xf32>
    tpu.vector_store %arg6[%c16, %c0_7], %10 {strides = array<i32>} : memref<36x288xf32, #tpu.memory_space<vmem>>, vector<4x288xf32>,
    %12 = vector.extract_strided_slice %1 {offsets = [0, 20], sizes = [4, 288], strides = [1, 1]} : vector<4x342xf32> to vector<4x288xf32>
    %c20 = arith.constant 20 : index
    %c0_8 = arith.constant 0 : index
    %13 = vector.load %arg6[%c20, %c0_8] : memref<36x288xf32, #tpu.memory_space<vmem>>, vector<4x288xf32>
    tpu.vector_store %arg6[%c20, %c0_8], %12 {strides = array<i32>} : memref<36x288xf32, #tpu.memory_space<vmem>>, vector<4x288xf32>,
    %14 = vector.extract_strided_slice %1 {offsets = [0, 36], sizes = [4, 288], strides = [1, 1]} : vector<4x342xf32> to vector<4x288xf32>
    %c24 = arith.constant 24 : index
    %c0_9 = arith.constant 0 : index
    %15 = vector.load %arg6[%c24, %c0_9] : memref<36x288xf32, #tpu.memory_space<vmem>>, vector<4x288xf32>
    tpu.vector_store %arg6[%c24, %c0_9], %14 {strides = array<i32>} : memref<36x288xf32, #tpu.memory_space<vmem>>, vector<4x288xf32>,
    %16 = vector.extract_strided_slice %1 {offsets = [0, 37], sizes = [4, 288], strides = [1, 1]} : vector<4x342xf32> to vector<4x288xf32>
    %c28 = arith.constant 28 : index
    %c0_10 = arith.constant 0 : index
    %17 = vector.load %arg6[%c28, %c0_10] : memref<36x288xf32, #tpu.memory_space<vmem>>, vector<4x288xf32>
    tpu.vector_store %arg6[%c28, %c0_10], %16 {strides = array<i32>} : memref<36x288xf32, #tpu.memory_space<vmem>>, vector<4x288xf32>,
    %18 = vector.extract_strided_slice %1 {offsets = [0, 38], sizes = [4, 288], strides = [1, 1]} : vector<4x342xf32> to vector<4x288xf32>
    %c32 = arith.constant 32 : index
    %c0_11 = arith.constant 0 : index
    %19 = vector.load %arg6[%c32, %c0_11] : memref<36x288xf32, #tpu.memory_space<vmem>>, vector<4x288xf32>
    tpu.vector_store %arg6[%c32, %c0_11], %18 {strides = array<i32>} : memref<36x288xf32, #tpu.memory_space<vmem>>, vector<4x288xf32>,
    %c0_12 = arith.constant 0 : index
    %c0_13 = arith.constant 0 : index
    %20 = vector.load %arg2[%c0_12, %c0_13] : memref<8x36xf32, #tpu.memory_space<vmem>>, vector<8x36xf32>
    %c0_14 = arith.constant 0 : index
    %c0_15 = arith.constant 0 : index
    %21 = vector.load %arg6[%c0_14, %c0_15] : memref<36x288xf32, #tpu.memory_space<vmem>>, vector<36x288xf32>
    %cst = arith.constant dense<0.000000e+00> : vector<8x288xf32>
    %22 = tpu.matmul %20, %21, %cst {dimension_numbers = #tpu.dot_dimension_numbers<[1], [0], [0], [1], [0, 0, 1, 1], [], []>} : vector<8x36xf32>, vector<36x288xf32>, vector<8x288xf32> -> vector<8x288xf32>
    %c0_16 = arith.constant 0 : index
    %c0_17 = arith.constant 0 : index
    %23 = vector.load %arg3[%c0_16, %c0_17] : memref<8x1xf32, #tpu.memory_space<vmem>>, vector<8x1xf32>
    %24 = vector.broadcast %23 : vector<8x1xf32> to vector<8x288xf32>
    %25 = arith.mulf %22, %24 : vector<8x288xf32>
    %c0_18 = arith.constant 0 : index
    %c0_19 = arith.constant 0 : index
    %26 = vector.load %arg4[%c0_18, %c0_19] : memref<8x1xf32, #tpu.memory_space<vmem>>, vector<8x1xf32>
    %27 = vector.broadcast %26 : vector<8x1xf32> to vector<8x288xf32>
    %28 = arith.addf %25, %27 : vector<8x288xf32>
    %cst_20 = arith.constant 0.000000e+00 : f32
    %29 = vector.broadcast %cst_20 : f32 to vector<8x288xf32>
    %30 = arith.maximumf %28, %29 : vector<8x288xf32>
    %c0_21 = arith.constant 0 : index
    %c0_22 = arith.constant 0 : index
    %c0_23 = arith.constant 0 : index
    %31 = vector.load %arg5[%c0_21, %c0_22, %c0_23] : memref<1x8x288xf32, #tpu.memory_space<vmem>>, vector<1x8x288xf32>
    %32 = vector.shape_cast %31 : vector<1x8x288xf32> to vector<8x288xf32>
    %33 = vector.shape_cast %30 : vector<8x288xf32> to vector<1x8x288xf32>
    tpu.vector_store %arg5[%c0_21, %c0_22, %c0_23], %33 {strides = array<i32>} : memref<1x8x288xf32, #tpu.memory_space<vmem>>, vector<1x8x288xf32>,
    return
  }
  func.func @transform_0(%arg0: i32) -> (i32, i32, i32) {
    %c0_i32 = arith.constant 0 : i32
    %c0_i32_0 = arith.constant 0 : i32
    %c0_i32_1 = arith.constant 0 : i32
    return %arg0, %c0_i32, %c0_i32_0 : i32, i32, i32
  }
  func.func @transform_1(%arg0: i32) -> (i32, i32) {
    %c0_i32 = arith.constant 0 : i32
    %c0_i32_0 = arith.constant 0 : i32
    %c0_i32_1 = arith.constant 0 : i32
    return %c0_i32, %c0_i32_0 : i32, i32
  }
  func.func @transform_2(%arg0: i32) -> (i32, i32) {
    %c0_i32 = arith.constant 0 : i32
    %c0_i32_0 = arith.constant 0 : i32
    %c0_i32_1 = arith.constant 0 : i32
    return %c0_i32, %c0_i32_0 : i32, i32
  }
  func.func @transform_3(%arg0: i32) -> (i32, i32) {
    %c0_i32 = arith.constant 0 : i32
    %c0_i32_0 = arith.constant 0 : i32
    %c0_i32_1 = arith.constant 0 : i32
    return %c0_i32, %c0_i32_0 : i32, i32
  }
  func.func @transform_4(%arg0: i32) -> (i32, i32, i32) {
    %c0_i32 = arith.constant 0 : i32
    %c0_i32_0 = arith.constant 0 : i32
    %c0_i32_1 = arith.constant 0 : i32
    return %arg0, %c0_i32, %c0_i32_0 : i32, i32, i32
  }
}

</mosaic_0001>

<llo_original>
// kernel: tpu_custom_call.1
$region0: #{tpu_custom_call.1}
  #allocation0 [shape = 'u32[]', space=smem, size = 0x4, offset = 0x4, fixed_abs, tag = 'smem constant byte address 0x4 - core index']
  #allocation1 [shape = 'u32[144,128]{1,0:T(1,128)}', space=vmem, size = 0x12000, scoped, tag = 'internal scratch']
  #allocation2 [shape = 'f32[36,288]{1,0:T(8,128)}', space=vmem, size = 0xf000, scoped, tag = 'scratch operand']
  %s0 = inlined_call_operand.hbm [shape: f32[2,4,342], index: 0, kind: input, shape index: {}]
  %s1 = inlined_call_operand.vmem [shape: f32[8,36], index: 1, kind: input, shape index: {}]
  %s2 = inlined_call_operand.vmem [shape: f32[8,1], index: 2, kind: input, shape index: {}]
  %s3 = inlined_call_operand.vmem [shape: f32[8,1], index: 3, kind: input, shape index: {}]
  %s4 = inlined_call_operand.hbm [shape: f32[2,8,288], index: 4, kind: output, shape index: {}]
  %s5 = sld [smem:[#allocation0]]
  $region53: #{tpu_custom_call.1} parent=0
    _
  %s7 = ssub.s32 1, %s5
  %s8 = scalar_select 0, %s7, %s5
  $region1: #{tpu_custom_call.1} parent=0
    #allocation3 [shape = 'u8[12288]{0}', space=vmem, size = 0x3000, scoped, tag = 'input window, operand 0']
    #allocation4 [shape = 's32[2]{0}', space=sflag, size = 0x8, scoped, tag = 'scoped memory for tpu_custom_call.1']
    #allocation5 [shape = 's32[2]{0}', space=sflag, size = 0x8, scoped, tag = 'scoped memory for tpu_custom_call.1']
    #allocation6 [shape = 'u8[24576]{0}', space=vmem, size = 0x6000, scoped, tag = 'output window, operand 0']
    %9 = vsyncpa [#allocation4], 0
    %s10 = scalar_lea.sflag [#allocation4], 1
    %11 = vsyncpa %s10, 0
    %12 = vsyncpa [#allocation5], 0
    %s13 = scalar_lea.sflag [#allocation5], 1
    %14 = vsyncpa %s13, 0
    loop: start=0, step=1, limit=4
    $region2: #{tpu_custom_call.1} parent=1 // loop_pre_header
      _
    $region3: #{tpu_custom_call.1} parent=1 // loop_header
      %s16 = sphi 0, %s20
      %p17 = scmp.ge.s32.totalorder %s16, 4
      %s26 = sphi 0, %s28
      %s29 = sphi 0, %s26
      %s30 = sphi 0, %s29
      %s46 = sphi 0, %s30
      %s50 = sphi 0, %s50
      %s52 = sphi 0, %s50
      %s53 = sphi 0, %s52
      %s67 = sphi 0, %s53
      %s71 = sphi 0, %s71
      %s73 = sphi 0, %s71
      %s74 = sphi 0, %s73
      %s88 = sphi 0, %s74
      %s92 = sphi 0, %s92
      %s94 = sphi 0, %s92
      %s95 = sphi 0, %s94
      %s109 = sphi 0, %s95
      %s115 = sphi 0, %s117
      %s118 = sphi 0, %s115
      %s119 = sphi 0, %s118
      %s135 = sphi 0, %s119
    $region4: #{tpu_custom_call.1} parent=1 // loop_header_branch
      %19 = sbr.rel (%p17) target = $region8
    $region5: #{tpu_custom_call.1} parent=1 // loop_body
      %s21 = ssub.s32 %s16, 1
      %s22 = ssub.s32 %s16, 2
      %s23 = sadd.s32 %s16, 1
      %s24 = ssub.s32 %s16, %s23
      %p25 = scmp.eq.s32.totalorder %s24, 0
      %s27 = sadd.s32 %s26, 1
      %s28 = scalar_select %p25, %s26, %s27
      %p31 = pneg %p25
      %p32 = scmp.eq.s32.totalorder %s16, 1
      %p33 = por %p31, %p32
      %p34 = scmp.ne.s32.totalorder %s26, %s29
      %p35 = scmp.eq.s32.totalorder %s16, 0
      %p36 = por %p34, %p35
      %p37 = scmp.ne.s32.totalorder %s26, %s29
      %p38 = scmp.eq.s32.totalorder %s21, 1
      %p39 = por %p37, %p38
      %p40 = scmp.ne.s32.totalorder %s29, %s30
      %p41 = scmp.eq.s32.totalorder %s21, 0
      %p42 = por %p40, %p41
      %p43 = scmp.ne.s32.totalorder %s29, %s30
      %p44 = scmp.eq.s32.totalorder %s22, 1
      %p45 = por %p43, %p44
      %p47 = scmp.ne.s32.totalorder %s30, %s46
      %p48 = scmp.eq.s32.totalorder %s22, 0
      %p49 = por %p47, %p48
      %s51 = sadd.s32 %s50, 1
      %p54 = scmp.eq.s32.totalorder %s16, 1
      %p55 = scmp.ne.s32.totalorder %s50, %s52
      %p56 = scmp.eq.s32.totalorder %s16, 0
      %p57 = por %p55, %p56
      %p58 = scmp.ne.s32.totalorder %s50, %s52
      %p59 = scmp.eq.s32.totalorder %s21, 1
      %p60 = por %p58, %p59
      %p61 = scmp.ne.s32.totalorder %s52, %s53
      %p62 = scmp.eq.s32.totalorder %s21, 0
      %p63 = por %p61, %p62
      %p64 = scmp.ne.s32.totalorder %s52, %s53
      %p65 = scmp.eq.s32.totalorder %s22, 1
      %p66 = por %p64, %p65
      %p68 = scmp.ne.s32.totalorder %s53, %s67
      %p69 = scmp.eq.s32.totalorder %s22, 0
      %p70 = por %p68, %p69
      %s72 = sadd.s32 %s71, 1
      %p75 = scmp.eq.s32.totalorder %s16, 1
      %p76 = scmp.ne.s32.totalorder %s71, %s73
      %p77 = scmp.eq.s32.totalorder %s16, 0
      %p78 = por %p76, %p77
      %p79 = scmp.ne.s32.totalorder %s71, %s73
      %p80 = scmp.eq.s32.totalorder %s21, 1
      %p81 = por %p79, %p80
      %p82 = scmp.ne.s32.totalorder %s73, %s74
      %p83 = scmp.eq.s32.totalorder %s21, 0
      %p84 = por %p82, %p83
      %p85 = scmp.ne.s32.totalorder %s73, %s74
      %p86 = scmp.eq.s32.totalorder %s22, 1
      %p87 = por %p85, %p86
      %p89 = scmp.ne.s32.totalorder %s74, %s88
      %p90 = scmp.eq.s32.totalorder %s22, 0
      %p91 = por %p89, %p90
      %s93 = sadd.s32 %s92, 1
      %p96 = scmp.eq.s32.totalorder %s16, 1
      %p97 = scmp.ne.s32.totalorder %s92, %s94
      %p98 = scmp.eq.s32.totalorder %s16, 0
      %p99 = por %p97, %p98
      %p100 = scmp.ne.s32.totalorder %s92, %s94
      %p101 = scmp.eq.s32.totalorder %s21, 1
      %p102 = por %p100, %p101
      %p103 = scmp.ne.s32.totalorder %s94, %s95
      %p104 = scmp.eq.s32.totalorder %s21, 0
      %p105 = por %p103, %p104
      %p106 = scmp.ne.s32.totalorder %s94, %s95
      %p107 = scmp.eq.s32.totalorder %s22, 1
      %p108 = por %p106, %p107
      %p110 = scmp.ne.s32.totalorder %s95, %s109
      %p111 = scmp.eq.s32.totalorder %s22, 0
      %p112 = por %p110, %p111
      %s113 = ssub.s32 %s16, %s23
      %p114 = scmp.eq.s32.totalorder %s113, 0
      %s116 = sadd.s32 %s115, 1
      %s117 = scalar_select %p114, %s115, %s116
      %p120 = pneg %p114
      %p121 = scmp.eq.s32.totalorder %s16, 1
      %p122 = por %p120, %p121
      %p123 = scmp.ne.s32.totalorder %s115, %s118
      %p124 = scmp.eq.s32.totalorder %s16, 0
      %p125 = por %p123, %p124
      %p126 = scmp.ne.s32.totalorder %s115, %s118
      %p127 = scmp.eq.s32.totalorder %s21, 1
      %p128 = por %p126, %p127
      %p129 = scmp.ne.s32.totalorder %s118, %s119
      %p130 = scmp.eq.s32.totalorder %s21, 0
      %p131 = por %p129, %p130
      %p132 = scmp.ne.s32.totalorder %s118, %s119
      %p133 = scmp.eq.s32.totalorder %s22, 1
      %p134 = por %p132, %p133
      %p136 = scmp.ne.s32.totalorder %s119, %s135
      %p137 = scmp.eq.s32.totalorder %s22, 0
      %p138 = por %p136, %p137
      %p139 = scmp.le.s32.totalorder 1, %s16
      %p140 = scmp.lt.s32.totalorder %s16, 3
      %p141 = pnand %p139, %p140
      %p142 = pneg %p141
      // Predicated region
      $region9: #{tpu_custom_call.1} parent=5 // pred_check
        _
      $region10: #{tpu_custom_call.1} parent=5 // pred_check_branch
        %144 = sbr.rel (%p141) target = $region12
      $region11: #{tpu_custom_call.1} parent=5 // pred_region
        %s145 = ssub.s32 %s16, 1
        // Predicated region
        $region13: #{tpu_custom_call.1} parent=11 // pred_check
          %p146 = pneg %p63
        $region14: #{tpu_custom_call.1} parent=11 // pred_check_branch
          %148 = sbr.rel (%p146) target = $region16
        $region15: #{tpu_custom_call.1} parent=11 // pred_region
          _
        $region16: #{tpu_custom_call.1} parent=11 // pred_fallthru
          _
        // Predicated region
        $region17: #{tpu_custom_call.1} parent=11 // pred_check
          %p149 = pneg %p84
        $region18: #{tpu_custom_call.1} parent=11 // pred_check_branch
          %151 = sbr.rel (%p149) target = $region20
        $region19: #{tpu_custom_call.1} parent=11 // pred_region
          _
        $region20: #{tpu_custom_call.1} parent=11 // pred_fallthru
          _
        // Predicated region
        $region21: #{tpu_custom_call.1} parent=11 // pred_check
          %p152 = pneg %p105
        $region22: #{tpu_custom_call.1} parent=11 // pred_check_branch
          %154 = sbr.rel (%p152) target = $region24
        $region23: #{tpu_custom_call.1} parent=11 // pred_region
          _
        $region24: #{tpu_custom_call.1} parent=11 // pred_fallthru
          _
      $region12: #{tpu_custom_call.1} parent=5 // pred_fallthru
        _
      %p155 = scmp.lt.s32.totalorder %s16, 2
      // Predicated region
      $region25: #{tpu_custom_call.1} parent=5 // pred_check
        %p156 = pneg %p155
      $region26: #{tpu_custom_call.1} parent=5 // pred_check_branch
        %158 = sbr.rel (%p156) target = $region28
      $region27: #{tpu_custom_call.1} parent=5 // pred_region
        // Predicated region
        $region29: #{tpu_custom_call.1} parent=27 // pred_check
          %p159 = pneg %p36
        $region30: #{tpu_custom_call.1} parent=27 // pred_check_branch
          %161 = sbr.rel (%p159) target = $region32
        $region31: #{tpu_custom_call.1} parent=27 // pred_region
          %s162 = sand.u32 %s26, 1
          %s163 = scalar_lea.sflag [#allocation4], %s162
          %s164 = sand.u32 %s26, 1
          %s165 = smul.addr %s164, 12
          %s166 = scalar_lea.vmem [#allocation3], %s165
          %s168 = ssub.s32 192, 192
          %169 = vsyncadd %s163, %s168
          %s170 = smul.addr %s16, 3
          %s171 = smul.addr %s170, 64
          %s172 = scalar_lea.hbm %s0, %s171
          %s174 = sshll.u32 %s166, 4
          %s175 = int_to_ptr.vmem [resolvable:$true] %s174
          %177 = dma.hbm_to_vmem [thread:$0]  %s172, 192, %s175, %s163
        $region32: #{tpu_custom_call.1} parent=27 // pred_fallthru
          _
      $region28: #{tpu_custom_call.1} parent=5 // pred_fallthru
        _
      %p178 = scmp.le.s32.totalorder 1, %s16
      %p179 = scmp.lt.s32.totalorder %s16, 3
      %p180 = pnand %p178, %p179
      %p181 = pneg %p180
      // Predicated region
      $region33: #{tpu_custom_call.1} parent=5 // pred_check
        _
      $region34: #{tpu_custom_call.1} parent=5 // pred_check_branch
        %183 = sbr.rel (%p180) target = $region36
      $region35: #{tpu_custom_call.1} parent=5 // pred_region
        %s184 = ssub.s32 %s16, 1
        %s185 = sand.u32 %s29, 1
        %s186 = scalar_lea.sflag [#allocation4], %s185
        %s187 = sand.u32 %s29, 1
        %s188 = smul.addr %s187, 12
        %s189 = scalar_lea.vmem [#allocation3], %s188
        // Predicated region
        $region37: #{tpu_custom_call.1} parent=35 // pred_check
          %p190 = pneg %p42
        $region38: #{tpu_custom_call.1} parent=35 // pred_check_branch
          %192 = sbr.rel (%p190) target = $region40
        $region39: #{tpu_custom_call.1} parent=35 // pred_region
          %193 = dma.done %s186, 192
        $region40: #{tpu_custom_call.1} parent=35 // pred_fallthru
          _
        %s194 = sand.u32 %s29, 1
        %s195 = scalar_lea.sflag [#allocation4], %s194
        %s196 = sand.u32 %s29, 1
        %s197 = smul.addr %s196, 12
        %s198 = scalar_lea.vmem [#allocation3], %s197
        %p199 = pneg %p42
        %p200 = pneg %p39
        %p201 = pneg %p63
        %p202 = pneg %p60
        %p203 = pneg %p84
        %p204 = pneg %p81
        %p205 = pneg %p105
        %p206 = pneg %p102
        %p207 = pneg %p131
        %p208 = pneg %p128
        %s209 = sand.u32 %s118, 1
        %s210 = scalar_lea.sflag [#allocation5], %s209
        %s211 = sand.u32 %s118, 1
        %s212 = smul.addr %s211, 24
        %s213 = scalar_lea.vmem [#allocation6], %s212
        %v214 = vld [vmem:[%s189] sm:$0xff]
        %v215 = vld [vmem:[%s189 + $0x8] sm:$0xf]
        %v218 = vcombine.high %v214, %v214
        %220 = vst [vmem:[#allocation2] sm:$0xf] %v214
        %221 = vst [vmem:[#allocation2 + $0x8] sm:$0xf] %v218
        %vm222 = vcmask 257024
        %223 = vst.msk [vmem:[#allocation2 + $0x10] sm:$0xf] %vm222, %v215
        %v224 = vcombine.low %v214, %v214
        %v225 = vcombine.low %v215, %v215
        %226 = vrot.lane.b32.xlu0 %v224, 127
        %v227 = vpop.permute.xlu0 %226
        %228 = vrot.lane.b32.xlu0 %v214, 127
        %v229 = vpop.permute.xlu0 %228
        %230 = vrot.lane.b32.xlu0 %v225, 127
        %v231 = vpop.permute.xlu0 %230
        %vm232 = vcmask 1039360
        %v233 = vsel %vm232, %v227, %v229
        %v234 = vsel %vm232, %v229, %v231
        %238 = vst [vmem:[#allocation2] sm:$0xf0] %v233
        %239 = vst [vmem:[#allocation2 + $0x8] sm:$0xf0] %v234
        %vm240 = vcmask 261124
        %241 = vst.msk [vmem:[#allocation2 + $0x10] sm:$0xf0] %vm240, %v231
        %242 = vrot.lane.b32.xlu0 %v214, 126
        %v243 = vpop.permute.xlu0 %242
        %244 = vrot.lane.b32.xlu0 %v218, 126
        %v245 = vpop.permute.xlu0 %244
        %246 = vrot.lane.b32.xlu0 %v215, 126
        %v247 = vpop.permute.xlu0 %246
        %vm248 = vcmask 1031168
        %v249 = vsel %vm248, %v243, %v245
        %v250 = vsel %vm248, %v245, %v247
        %254 = vst [vmem:[#allocation2 + $0x18] sm:$0xf] %v249
        %255 = vst [vmem:[#allocation2 + $0x20] sm:$0xf] %v250
        %256 = vst.msk [vmem:[#allocation2 + $0x28] sm:$0xf] %vm222, %v247
        %257 = vrot.lane.b32.xlu0 %v224, 110
        %v258 = vpop.permute.xlu0 %257
        %259 = vrot.lane.b32.xlu0 %v214, 110
        %v260 = vpop.permute.xlu0 %259
        %261 = vrot.lane.b32.xlu0 %v225, 110
        %v262 = vpop.permute.xlu0 %261
        %vm263 = vcmask 900096
        %v264 = vsel %vm263, %v258, %v260
        %v265 = vsel %vm263, %v260, %v262
        %269 = vst [vmem:[#allocation2 + $0x18] sm:$0xf0] %v264
        %270 = vst [vmem:[#allocation2 + $0x20] sm:$0xf0] %v265
        %271 = vst.msk [vmem:[#allocation2 + $0x28] sm:$0xf0] %vm240, %v262
        %272 = vrot.lane.b32.xlu0 %v214, 109
        %v273 = vpop.permute.xlu0 %272
        %274 = vrot.lane.b32.xlu0 %v218, 109
        %v275 = vpop.permute.xlu0 %274
        %276 = vrot.lane.b32.xlu0 %v215, 109
        %v277 = vpop.permute.xlu0 %276
        %vm278 = vcmask 891904
        %v279 = vsel %vm278, %v273, %v275
        %v280 = vsel %vm278, %v275, %v277
        %284 = vst [vmem:[#allocation2 + $0x30] sm:$0xf] %v279
        %285 = vst [vmem:[#allocation2 + $0x38] sm:$0xf] %v280
        %286 = vst.msk [vmem:[#allocation2 + $0x40] sm:$0xf] %vm222, %v277
        %287 = vrot.lane.b32.xlu0 %v224, 108
        %v288 = vpop.permute.xlu0 %287
        %289 = vrot.lane.b32.xlu0 %v214, 108
        %v290 = vpop.permute.xlu0 %289
        %291 = vrot.lane.b32.xlu0 %v225, 108
        %v292 = vpop.permute.xlu0 %291
        %vm293 = vcmask 883712
        %v294 = vsel %vm293, %v288, %v290
        %v295 = vsel %vm293, %v290, %v292
        %299 = vst [vmem:[#allocation2 + $0x30] sm:$0xf0] %v294
        %300 = vst [vmem:[#allocation2 + $0x38] sm:$0xf0] %v295
        %301 = vst.msk [vmem:[#allocation2 + $0x40] sm:$0xf0] %vm240, %v292
        %302 = vrot.lane.b32.xlu0 %v214, 92
        %v303 = vpop.permute.xlu0 %302
        %304 = vrot.lane.b32.xlu0 %v218, 92
        %v305 = vpop.permute.xlu0 %304
        %306 = vrot.lane.b32.xlu0 %v215, 92
        %v307 = vpop.permute.xlu0 %306
        %vm308 = vcmask 752640
        %v309 = vsel %vm308, %v303, %v305
        %v310 = vsel %vm308, %v305, %v307
        %314 = vst [vmem:[#allocation2 + $0x48] sm:$0xf] %v309
        %315 = vst [vmem:[#allocation2 + $0x50] sm:$0xf] %v310
        %316 = vst.msk [vmem:[#allocation2 + $0x58] sm:$0xf] %vm222, %v307
        %317 = vrot.lane.b32.xlu0 %v224, 91
        %v318 = vpop.permute.xlu0 %317
        %319 = vrot.lane.b32.xlu0 %v214, 91
        %v320 = vpop.permute.xlu0 %319
        %321 = vrot.lane.b32.xlu0 %v225, 91
        %v322 = vpop.permute.xlu0 %321
        %vm323 = vcmask 744448
        %v324 = vsel %vm323, %v318, %v320
        %v325 = vsel %vm323, %v320, %v322
        %329 = vst [vmem:[#allocation2 + $0x48] sm:$0xf0] %v324
        %330 = vst [vmem:[#allocation2 + $0x50] sm:$0xf0] %v325
        %331 = vst.msk [vmem:[#allocation2 + $0x58] sm:$0xf0] %vm240, %v322
        %332 = vrot.lane.b32.xlu0 %v214, 90
        %v333 = vpop.permute.xlu0 %332
        %334 = vrot.lane.b32.xlu0 %v218, 90
        %v335 = vpop.permute.xlu0 %334
        %336 = vrot.lane.b32.xlu0 %v215, 90
        %v337 = vpop.permute.xlu0 %336
        %vm338 = vcmask 736256
        %v339 = vsel %vm338, %v333, %v335
        %v340 = vsel %vm338, %v335, %v337
        %344 = vst [vmem:[#allocation2 + $0x60] sm:$0xf] %v339
        %345 = vst [vmem:[#allocation2 + $0x68] sm:$0xf] %v340
        %346 = vst.msk [vmem:[#allocation2 + $0x70] sm:$0xf] %vm222, %v337
        %v347 = vld [vmem:[%s1] sm:$0xff]
        %v348 = vld [vmem:[#allocation2] sm:$0xff]
        %v349 = vld [vmem:[#allocation2 + $0x8] sm:$0xff]
        %v350 = vld [vmem:[#allocation2 + $0x10] sm:$0xff]
        %v351 = vld [vmem:[#allocation2 + $0x18] sm:$0xff]
        %v352 = vld [vmem:[#allocation2 + $0x20] sm:$0xff]
        %v353 = vld [vmem:[#allocation2 + $0x28] sm:$0xff]
        %v354 = vld [vmem:[#allocation2 + $0x30] sm:$0xff]
        %v355 = vld [vmem:[#allocation2 + $0x38] sm:$0xff]
        %v356 = vld [vmem:[#allocation2 + $0x40] sm:$0xff]
        %v357 = vld [vmem:[#allocation2 + $0x48] sm:$0xff]
        %v358 = vld [vmem:[#allocation2 + $0x50] sm:$0xff]
        %v359 = vld [vmem:[#allocation2 + $0x58] sm:$0xff]
        %v360 = vld [vmem:[#allocation2 + $0x60] sm:$0xf]
        %v361 = vld [vmem:[#allocation2 + $0x68] sm:$0xf]
        %v362 = vld [vmem:[#allocation2 + $0x70] sm:$0xf]
        %vm363 = vcmask 293888
        %v365 = vsel %vm363, %v347, 0
        %vm367 = vcmask 1043456
        %v369 = vsel %vm367, %v360, 0
        %v372 = vsel %vm367, %v361, 0
        %v375 = vsel %vm367, %v362, 0
        %377 = vmatprep.subr.mxu0 0.0
        %378 = vmatpush1.msra.mxu0 0.0
        %379 = vmatprep.subr.mxu0 0.0
        %380 = vmatpush1.msra.mxu0 0.0
        %381 = vmatprep.subr.mxu0 0.0
        %382 = vmatpush1.msra.mxu0 0.0
        %383 = vmatprep.subr.mxu0 0.0
        %384 = vmatpush1.msra.mxu0 0.0
        %385 = vmatprep.subr.mxu0 0.0
        %386 = vmatpush1.msra.mxu0 0.0
        %387 = vmatprep.subr.mxu0 0.0
        %388 = vmatpush1.msra.mxu0 0.0
        %389 = vmatprep.subr.mxu0 0.0
        %390 = vmatpush1.msra.mxu0 0.0
        %391 = vmatprep.subr.mxu0 0.0
        %392 = vmatpush1.msra.mxu0 0.0
        %393 = vmatprep.subr.mxu0 0.0
        %394 = vmatpush1.msra.mxu0 0.0
        %395 = vmatprep.subr.mxu0 0.0
        %396 = vmatpush1.msra.mxu0 0.0
        %397 = vmatprep.subr.mxu0 0.0
        %398 = vmatpush1.msra.mxu0 0.0
        %399 = vmatprep.subr.mxu0 %v372
        %400 = vmatpush1.msra.mxu0 %v369
        %401 = vmatprep.subr.mxu0 %v358
        %402 = vmatpush1.msra.mxu0 %v357
        %403 = vmatprep.subr.mxu0 %v355
        %404 = vmatpush1.msra.mxu0 %v354
        %405 = vmatprep.subr.mxu0 %v352
        %406 = vmatpush1.msra.mxu0 %v351
        %407 = vmatprep.subr.mxu0 %v349
        %408 = vmatpush1.msra.mxu0 %v348
        %409 = vmatprep.subr.mxu0 0.0
        %410 = vmatpush2.msra.mxu0 0.0
        %411 = vmatprep.subr.mxu0 0.0
        %412 = vmatpush2.msra.mxu0 0.0
        %413 = vmatprep.subr.mxu0 0.0
        %414 = vmatpush2.msra.mxu0 0.0
        %415 = vmatprep.subr.mxu0 0.0
        %416 = vmatpush2.msra.mxu0 0.0
        %417 = vmatprep.subr.mxu0 0.0
        %418 = vmatpush2.msra.mxu0 0.0
        %419 = vmatprep.subr.mxu0 0.0
        %420 = vmatpush2.msra.mxu0 0.0
        %421 = vmatprep.subr.mxu0 0.0
        %422 = vmatpush2.msra.mxu0 0.0
        %423 = vmatprep.subr.mxu0 0.0
        %424 = vmatpush2.msra.mxu0 0.0
        %425 = vmatprep.subr.mxu0 0.0
        %426 = vmatpush2.msra.mxu0 0.0
        %427 = vmatprep.subr.mxu0 0.0
        %428 = vmatpush2.msra.mxu0 0.0
        %429 = vmatprep.subr.mxu0 0.0
        %430 = vmatpush2.msra.mxu0 0.0
        %431 = vmatprep.subr.mxu0 0.0
        %432 = vmatpush2.msra.mxu0 0.0
        %433 = vmatprep.subr.mxu0 0.0
        %434 = vmatpush2.msra.mxu0 0.0
        %435 = vmatprep.subr.mxu0 0.0
        %436 = vmatpush2.msra.mxu0 0.0
        %437 = vmatprep.subr.mxu0 0.0
        %438 = vmatpush2.msra.mxu0 0.0
        %439 = vmatprep.subr.mxu0 0.0
        %440 = vmatpush2.msra.mxu0 0.0
        %441 = vmatprep.mubr.f32.mxu0 0.0
        %442 = vmatmul.mubr.f32.gmra.mxu0 %v365
        %v443 = vpop.f32.mrf.mxu0
        %v444 = vadd.f32 0.0, %v443
        %v445 = vpop.f32.mrf.mxu0
        %v446 = vadd.f32 0.0, %v445
        %447 = vdwg.mxu0
        %448 = vmatprep.subr.mxu0 0.0
        %449 = vmatpush1.msra.mxu0 0.0
        %450 = vmatprep.subr.mxu0 0.0
        %451 = vmatpush1.msra.mxu0 0.0
        %452 = vmatprep.subr.mxu0 0.0
        %453 = vmatpush1.msra.mxu0 0.0
        %454 = vmatprep.subr.mxu0 0.0
        %455 = vmatpush1.msra.mxu0 0.0
        %456 = vmatprep.subr.mxu0 0.0
        %457 = vmatpush1.msra.mxu0 0.0
        %458 = vmatprep.subr.mxu0 0.0
        %459 = vmatpush1.msra.mxu0 0.0
        %460 = vmatprep.subr.mxu0 0.0
        %461 = vmatpush1.msra.mxu0 0.0
        %462 = vmatprep.subr.mxu0 0.0
        %463 = vmatpush1.msra.mxu0 0.0
        %464 = vmatprep.subr.mxu0 0.0
        %465 = vmatpush1.msra.mxu0 0.0
        %466 = vmatprep.subr.mxu0 0.0
        %467 = vmatpush1.msra.mxu0 0.0
        %468 = vmatprep.subr.mxu0 0.0
        %469 = vmatpush1.msra.mxu0 0.0
        %470 = vmatprep.subr.mxu0 0.0
        %471 = vmatpush1.msra.mxu0 %v375
        %472 = vmatprep.subr.mxu0 0.0
        %473 = vmatpush1.msra.mxu0 %v359
        %474 = vmatprep.subr.mxu0 0.0
        %475 = vmatpush1.msra.mxu0 %v356
        %476 = vmatprep.subr.mxu0 0.0
        %477 = vmatpush1.msra.mxu0 %v353
        %478 = vmatprep.subr.mxu0 0.0
        %479 = vmatpush1.msra.mxu0 %v350
        %480 = vmatprep.subr.mxu0 0.0
        %481 = vmatpush2.msra.mxu0 0.0
        %482 = vmatprep.subr.mxu0 0.0
        %483 = vmatpush2.msra.mxu0 0.0
        %484 = vmatprep.subr.mxu0 0.0
        %485 = vmatpush2.msra.mxu0 0.0
        %486 = vmatprep.subr.mxu0 0.0
        %487 = vmatpush2.msra.mxu0 0.0
        %488 = vmatprep.subr.mxu0 0.0
        %489 = vmatpush2.msra.mxu0 0.0
        %490 = vmatprep.subr.mxu0 0.0
        %491 = vmatpush2.msra.mxu0 0.0
        %492 = vmatprep.subr.mxu0 0.0
        %493 = vmatpush2.msra.mxu0 0.0
        %494 = vmatprep.subr.mxu0 0.0
        %495 = vmatpush2.msra.mxu0 0.0
        %496 = vmatprep.subr.mxu0 0.0
        %497 = vmatpush2.msra.mxu0 0.0
        %498 = vmatprep.subr.mxu0 0.0
        %499 = vmatpush2.msra.mxu0 0.0
        %500 = vmatprep.subr.mxu0 0.0
        %501 = vmatpush2.msra.mxu0 0.0
        %502 = vmatprep.subr.mxu0 0.0
        %503 = vmatpush2.msra.mxu0 0.0
        %504 = vmatprep.subr.mxu0 0.0
        %505 = vmatpush2.msra.mxu0 0.0
        %506 = vmatprep.subr.mxu0 0.0
        %507 = vmatpush2.msra.mxu0 0.0
        %508 = vmatprep.subr.mxu0 0.0
        %509 = vmatpush2.msra.mxu0 0.0
        %510 = vmatprep.subr.mxu0 0.0
        %511 = vmatpush2.msra.mxu0 0.0
        %512 = vmatprep.mubr.f32.mxu0 0.0
        %513 = vmatmul.mubr.f32.gmra.mxu0 %v365
        %v514 = vpop.f32.mrf.mxu0
        %v515 = vadd.f32 0.0, %v514
        %v516 = vpop.f32.mrf.mxu0
        %517 = vdwg.mxu0
        %v518 = vld [vmem:[%s2] sm:$0xff]
        %520 = vset.pattern.permute.xlu0 0
        %521 = vperm.xlu0 %520, %v518
        %v522 = vpop.permute.xlu0 %521
        %v524 = vmul.f32 %v444, %v522
        %v525 = vmul.f32 %v446, %v522
        %v526 = vmul.f32 %v515, %v522
        %v527 = vld [vmem:[%s3] sm:$0xff]
        %529 = vset.pattern.permute.xlu0 0
        %530 = vperm.xlu0 %529, %v527
        %v531 = vpop.permute.xlu0 %530
        %v533 = vadd.f32 %v524, %v531
        %v534 = vadd.f32 %v525, %v531
        %v535 = vadd.f32 %v526, %v531
        %v536 = vmax.f32 %v533, 0.0
        %v537 = vmax.f32 %v534, 0.0
        %v538 = vmax.f32 %v535, 0.0
        %539 = vst [vmem:[%s213] sm:$0xff] %v536
        %540 = vst [vmem:[%s213 + $0x8] sm:$0xff] %v537
        %vm541 = vcmask 261120
        %542 = vst.msk [vmem:[%s213 + $0x10] sm:$0xff] %vm541, %v538
        %s543 = sand.u32 %s118, 1
        %s544 = scalar_lea.sflag [#allocation5], %s543
        %s545 = sand.u32 %s118, 1
        %s546 = smul.addr %s545, 24
        %s547 = scalar_lea.vmem [#allocation6], %s546
        // Predicated region
        $region41: #{tpu_custom_call.1} parent=35 // pred_check
          %p548 = pneg %p128
        $region42: #{tpu_custom_call.1} parent=35 // pred_check_branch
          %550 = sbr.rel (%p548) target = $region44
        $region43: #{tpu_custom_call.1} parent=35 // pred_region
          %s552 = ssub.s32 384, 384
          %553 = vsyncadd %s544, %s552
          %s554 = smul.addr %s21, 3
          %s555 = smul.addr %s554, 128
          %s556 = scalar_lea.hbm %s4, %s555
          %s558 = sshll.u32 %s547, 4
          %s559 = int_to_ptr.vmem [resolvable:$true] %s558
          %561 = dma.vmem_to_hbm [thread:$0]  %s559, 384, %s556, %s544
        $region44: #{tpu_custom_call.1} parent=35 // pred_fallthru
          _
      $region36: #{tpu_custom_call.1} parent=5 // pred_fallthru
        _
      %p562 = scmp.le.s32.totalorder 2, %s16
      // Predicated region
      $region45: #{tpu_custom_call.1} parent=5 // pred_check
        %p563 = pneg %p562
      $region46: #{tpu_custom_call.1} parent=5 // pred_check_branch
        %565 = sbr.rel (%p563) target = $region48
      $region47: #{tpu_custom_call.1} parent=5 // pred_region
        %s566 = ssub.s32 %s16, 2
        // Predicated region
        $region49: #{tpu_custom_call.1} parent=47 // pred_check
          %p567 = pneg %p134
        $region50: #{tpu_custom_call.1} parent=47 // pred_check_branch
          %569 = sbr.rel (%p567) target = $region52
        $region51: #{tpu_custom_call.1} parent=47 // pred_region
          %s570 = sand.u32 %s119, 1
          %s571 = scalar_lea.sflag [#allocation5], %s570
          %s572 = sand.u32 %s119, 1
          %s573 = smul.addr %s572, 24
          %s574 = scalar_lea.vmem [#allocation6], %s573
          %575 = dma.done %s571, 384
        $region52: #{tpu_custom_call.1} parent=47 // pred_fallthru
          _
      $region48: #{tpu_custom_call.1} parent=5 // pred_fallthru
        _
    $region6: #{tpu_custom_call.1} parent=1 // loop_footer
      %s20 = sadd.s32 1, %s16
    $region7: #{tpu_custom_call.1} parent=1 // loop_footer_branch
      %15 = sbr.rel target = $region3
    $region8: #{tpu_custom_call.1} parent=1 // loop_exit
      _
    %576 = vsyncpa [#allocation4], 1
    %s577 = scalar_lea.sflag [#allocation4], 1
    %578 = vsyncpa %s577, 1
    %579 = vsyncpa [#allocation5], 1
    %s580 = scalar_lea.sflag [#allocation5], 1
    %581 = vsyncpa %s580, 1

</llo_original>
